<compile_context>
chip_gen: v7x
topology: tpu7x:2x2x1
jax: 0.10.0
libtpu: 0.0.40
codegen_flags: <defaults>
</compile_context>

<pallas_src>
import functools

import jax
import jax.numpy as jnp
from jax.experimental import pallas as pl
from jax.experimental.pallas import tpu as pltpu


def _round_up(n, m):
    return ((n + m - 1) // m) * m


def _mlp_kernel(x_ref, w1_ref, w2_ref, w3_ref, w4_ref, w5t_ref, b_ref, o_ref,
                *, widths):
    n1, n2, n3, n4, _ = widths

    x = x_ref[...]                                    # (TILE_B, 2) f32

    # dense_1 (in_features = 2): two VPU broadcast FMAs, no MXU pass.
    w1 = w1_ref[...]                                  # (2, n1) f32
    h = (x[:, 0:1] * w1[0:1, :]
         + x[:, 1:2] * w1[1:2, :]
         + b_ref[0:1, 0:n1])                          # (TILE_B, n1) f32
    h = jnp.maximum(h, 0.0)                           # relu  (drop_1 = identity)

    # dense_2 / dense_3 / dense_4: bf16 MXU matmuls, f32 accumulate.
    h = jnp.dot(h.astype(jnp.bfloat16), w2_ref[...],
                preferred_element_type=jnp.float32) + b_ref[1:2, 0:n2]
    h = jnp.maximum(h, 0.0)                           # relu  (drop_2 = identity)

    h = jnp.dot(h.astype(jnp.bfloat16), w3_ref[...],
                preferred_element_type=jnp.float32) + b_ref[2:3, 0:n3]
    h = jnp.maximum(h, 0.0)                           # relu  (drop_3 = identity)

    h = jnp.dot(h.astype(jnp.bfloat16), w4_ref[...],
                preferred_element_type=jnp.float32) + b_ref[3:4, 0:n4]
    h = jnp.maximum(h, 0.0)                           # relu

    # flatten is a no-op for (TILE_B, 200).
    # pred_layer, computed transposed so the output store is lane-dense:
    # (1, 200) contracted with (TILE_B, 200) on their last dims -> (1, TILE_B).
    out_t = jax.lax.dot_general(
        w5t_ref[...], h.astype(jnp.bfloat16),
        dimension_numbers=(((1,), (1,)), ((), ())),
        preferred_element_type=jnp.float32)
    o_ref[...] = out_t + b_ref[4:5, 0:1]


@functools.partial(jax.jit, static_argnames=("tile_b",))
def mlp_forward(x, params, tile_b=512):
    """x: (B, 2) float32.  params: list of 5 (W(in,out), b(out,)) tuples."""
    B = x.shape[0]
    widths = tuple(int(w.shape[1]) for w, _ in params)   # (n1, n2, n3, n4, 1)
    n1, n2, n3, n4, _ = widths

    # Row tiling; lane-dense output wants tile_b to be a multiple of 128.
    tile_b = min(tile_b, _round_up(max(B, 1), 128))
    b_pad = _round_up(B, tile_b)
    num_tiles = b_pad // tile_b

    x_in = jnp.pad(x.astype(jnp.float32), ((0, b_pad - B), (0, 0)))

    (w1, _), (w2, _), (w3, _), (w4, _), (w5, _) = params
    w1 = w1.astype(jnp.float32)              # used on the VPU (K = 2)
    w2 = w2.astype(jnp.bfloat16)
    w3 = w3.astype(jnp.bfloat16)
    w4 = w4.astype(jnp.bfloat16)
    w5t = w5.T.astype(jnp.bfloat16)          # (1, n4)

    # Pack the five biases into one (5, BPAD) f32 buffer (one DMA).
    bpad = _round_up(max(widths), 128)
    b_all = jnp.zeros((len(params), bpad), jnp.float32)
    for j, (_, b) in enumerate(params):
        b_all = b_all.at[j, : widths[j]].set(b.reshape(-1).astype(jnp.float32))

    kernel = functools.partial(_mlp_kernel, widths=widths)

    out_2d = pl.pallas_call(
        kernel,
        out_shape=jax.ShapeDtypeStruct((num_tiles, tile_b), jnp.float32),
        grid=(num_tiles,),
        in_specs=[
            pl.BlockSpec((tile_b, 2), lambda i: (i, 0)),          # x tile (pipelined)
            pl.BlockSpec((2, n1), lambda i: (0, 0)),              # w1 (VMEM-resident)
            pl.BlockSpec((n1, n2), lambda i: (0, 0)),             # w2
            pl.BlockSpec((n2, n3), lambda i: (0, 0)),             # w3
            pl.BlockSpec((n3, n4), lambda i: (0, 0)),             # w4
            pl.BlockSpec((1, n4), lambda i: (0, 0)),              # w5^T
            pl.BlockSpec((len(params), bpad), lambda i: (0, 0)),  # packed biases
        ],
        out_specs=pl.BlockSpec((1, tile_b), lambda i: (i, 0)),    # lane-dense rows
        compiler_params=pltpu.CompilerParams(
            dimension_semantics=("parallel",)),
    )(x_in, w1, w2, w3, w4, w5t, b_all)

    return out_2d.reshape(b_pad, 1)[:B]


def init_linear(key, fan_in, fan_out):
    """Deterministic PyTorch-Linear-style init; weight returned as (in, out)."""
    kw, kb = jax.random.split(key)
    bound = 1.0 / jnp.sqrt(float(fan_in))
    w = jax.random.uniform(kw, (fan_in, fan_out), jnp.float32, -bound, bound)
    b = jax.random.uniform(kb, (fan_out,), jnp.float32, -bound, bound)
    return w, b


if __name__ == "__main__":
    # Small, module-consistent sizes: input features = 2 (fixed by the module),
    # entry/mid widths shrunk from the default 100 for a compact test.
    B = 8
    num_entryneurons = 32
    num_midneurons = 32

    key = jax.random.PRNGKey(0)
    kx, k1, k2, k3, k4, k5 = jax.random.split(key, 6)

    x = jax.random.normal(kx, (B, 2), jnp.float32)

    params = [
        init_linear(k1, 2, num_entryneurons),               # dense_1
        init_linear(k2, num_entryneurons, num_midneurons),  # dense_2
        init_linear(k3, num_midneurons, num_midneurons),    # dense_3
        init_linear(k4, num_midneurons, 200),               # dense_4
        init_linear(k5, 200, 1),                            # pred_layer
    ]

    out = mlp_forward(x, params)
    out = jax.block_until_ready(out)
    assert out.shape == (B, 1)

    # Pure-JAX reference with matching precision (bf16 matmuls, f32 accumulate).
    def ref(x, params):
        (w1, b1), *rest = params
        h = jnp.maximum(x @ w1 + b1, 0.0)
        for idx, (w, b) in enumerate(rest):
            h = jnp.dot(h.astype(jnp.bfloat16), w.astype(jnp.bfloat16),
                        preferred_element_type=jnp.float32) + b
            if idx < len(rest) - 1:
                h = jnp.maximum(h, 0.0)
        return h

    expected = ref(x, params)
    assert jnp.allclose(out, expected, atol=2e-3, rtol=2e-3), (
        float(jnp.max(jnp.abs(out - expected))))

    print("KERNEL_OK")
</pallas_src>

<mosaic_0001>
module attributes {stable_mosaic.version = 11 : i64} {
  func.func @_mlp_kernel(%arg0: i32, %arg1: memref<128x2xf32, #tpu.memory_space<vmem>>, %arg2: memref<2x32xf32, #tpu.memory_space<vmem>>, %arg3: memref<32x32xbf16, #tpu.memory_space<vmem>>, %arg4: memref<32x32xbf16, #tpu.memory_space<vmem>>, %arg5: memref<32x200xbf16, #tpu.memory_space<vmem>>, %arg6: memref<1x200xbf16, #tpu.memory_space<vmem>>, %arg7: memref<5x256xf32, #tpu.memory_space<vmem>>, %arg8: memref<1x128xf32, #tpu.memory_space<vmem>>) attributes {dimension_semantics = [#tpu.dimension_semantics<parallel>], iteration_bounds = array<i64: 1>, scalar_prefetch = 0 : i64, scratch_operands = 0 : i64, tpu.core_type = #tpu.core_type<tc>, window_params = [{transform_indices = @transform_0, window_bounds = array<i64: 128, 2>}, {pipeline_mode = #tpu.pipeline_mode<synchronous>, transform_indices = @transform_1, window_bounds = array<i64: 2, 32>}, {pipeline_mode = #tpu.pipeline_mode<synchronous>, transform_indices = @transform_2, window_bounds = array<i64: 32, 32>}, {pipeline_mode = #tpu.pipeline_mode<synchronous>, transform_indices = @transform_3, window_bounds = array<i64: 32, 32>}, {pipeline_mode = #tpu.pipeline_mode<synchronous>, transform_indices = @transform_4, window_bounds = array<i64: 32, 200>}, {pipeline_mode = #tpu.pipeline_mode<synchronous>, transform_indices = @transform_5, window_bounds = array<i64: 1, 200>}, {pipeline_mode = #tpu.pipeline_mode<synchronous>, transform_indices = @transform_6, window_bounds = array<i64: 5, 256>}, {transform_indices = @transform_7, window_bounds = array<i64: 1, 128>}]} {
    %c0 = arith.constant 0 : index
    %c0_0 = arith.constant 0 : index
    %0 = vector.load %arg1[%c0, %c0_0] : memref<128x2xf32, #tpu.memory_space<vmem>>, vector<128x2xf32>
    %c0_1 = arith.constant 0 : index
    %c0_2 = arith.constant 0 : index
    %1 = vector.load %arg2[%c0_1, %c0_2] : memref<2x32xf32, #tpu.memory_space<vmem>>, vector<2x32xf32>
    %2 = vector.extract_strided_slice %0 {offsets = [0, 0], sizes = [128, 1], strides = [1, 1]} : vector<128x2xf32> to vector<128x1xf32>
    %3 = vector.extract_strided_slice %1 {offsets = [0, 0], sizes = [1, 32], strides = [1, 1]} : vector<2x32xf32> to vector<1x32xf32>
    %4 = vector.broadcast %2 : vector<128x1xf32> to vector<128x32xf32>
    %5 = vector.broadcast %3 : vector<1x32xf32> to vector<128x32xf32>
    %6 = arith.mulf %4, %5 : vector<128x32xf32>
    %7 = vector.extract_strided_slice %0 {offsets = [0, 1], sizes = [128, 1], strides = [1, 1]} : vector<128x2xf32> to vector<128x1xf32>
    %8 = vector.extract_strided_slice %1 {offsets = [1, 0], sizes = [1, 32], strides = [1, 1]} : vector<2x32xf32> to vector<1x32xf32>
    %9 = vector.broadcast %7 : vector<128x1xf32> to vector<128x32xf32>
    %10 = vector.broadcast %8 : vector<1x32xf32> to vector<128x32xf32>
    %11 = arith.mulf %9, %10 : vector<128x32xf32>
    %12 = arith.addf %6, %11 : vector<128x32xf32>
    %c0_3 = arith.constant 0 : index
    %c0_4 = arith.constant 0 : index
    %13 = vector.load %arg7[%c0_3, %c0_4] : memref<5x256xf32, #tpu.memory_space<vmem>>, vector<1x32xf32>
    %14 = vector.broadcast %13 : vector<1x32xf32> to vector<128x32xf32>
    %15 = arith.addf %12, %14 : vector<128x32xf32>
    %cst = arith.constant 0.000000e+00 : f32
    %16 = vector.broadcast %cst : f32 to vector<128x32xf32>
    %17 = arith.maximumf %15, %16 : vector<128x32xf32>
    %18 = arith.truncf %17 : vector<128x32xf32> to vector<128x32xbf16>
    %c0_5 = arith.constant 0 : index
    %c0_6 = arith.constant 0 : index
    %19 = vector.load %arg3[%c0_5, %c0_6] : memref<32x32xbf16, #tpu.memory_space<vmem>>, vector<32x32xbf16>
    %cst_7 = arith.constant dense<0.000000e+00> : vector<128x32xf32>
    %20 = tpu.matmul %18, %19, %cst_7 {dimension_numbers = #tpu.dot_dimension_numbers<[1], [0], [0], [1], [0, 0, 1, 1], [], []>} : vector<128x32xbf16>, vector<32x32xbf16>, vector<128x32xf32> -> vector<128x32xf32>
    %c1 = arith.constant 1 : index
    %c0_8 = arith.constant 0 : index
    %21 = vector.load %arg7[%c1, %c0_8] : memref<5x256xf32, #tpu.memory_space<vmem>>, vector<1x32xf32>
    %22 = vector.broadcast %21 : vector<1x32xf32> to vector<128x32xf32>
    %23 = arith.addf %20, %22 : vector<128x32xf32>
    %cst_9 = arith.constant 0.000000e+00 : f32
    %24 = vector.broadcast %cst_9 : f32 to vector<128x32xf32>
    %25 = arith.maximumf %23, %24 : vector<128x32xf32>
    %26 = arith.truncf %25 : vector<128x32xf32> to vector<128x32xbf16>
    %c0_10 = arith.constant 0 : index
    %c0_11 = arith.constant 0 : index
    %27 = vector.load %arg4[%c0_10, %c0_11] : memref<32x32xbf16, #tpu.memory_space<vmem>>, vector<32x32xbf16>
    %cst_12 = arith.constant dense<0.000000e+00> : vector<128x32xf32>
    %28 = tpu.matmul %26, %27, %cst_12 {dimension_numbers = #tpu.dot_dimension_numbers<[1], [0], [0], [1], [0, 0, 1, 1], [], []>} : vector<128x32xbf16>, vector<32x32xbf16>, vector<128x32xf32> -> vector<128x32xf32>
    %c2 = arith.constant 2 : index
    %c0_13 = arith.constant 0 : index
    %29 = vector.load %arg7[%c2, %c0_13] : memref<5x256xf32, #tpu.memory_space<vmem>>, vector<1x32xf32>
    %30 = vector.broadcast %29 : vector<1x32xf32> to vector<128x32xf32>
    %31 = arith.addf %28, %30 : vector<128x32xf32>
    %cst_14 = arith.constant 0.000000e+00 : f32
    %32 = vector.broadcast %cst_14 : f32 to vector<128x32xf32>
    %33 = arith.maximumf %31, %32 : vector<128x32xf32>
    %34 = arith.truncf %33 : vector<128x32xf32> to vector<128x32xbf16>
    %c0_15 = arith.constant 0 : index
    %c0_16 = arith.constant 0 : index
    %35 = vector.load %arg5[%c0_15, %c0_16] : memref<32x200xbf16, #tpu.memory_space<vmem>>, vector<32x200xbf16>
    %cst_17 = arith.constant dense<0.000000e+00> : vector<128x200xf32>
    %36 = tpu.matmul %34, %35, %cst_17 {dimension_numbers = #tpu.dot_dimension_numbers<[1], [0], [0], [1], [0, 0, 1, 1], [], []>} : vector<128x32xbf16>, vector<32x200xbf16>, vector<128x200xf32> -> vector<128x200xf32>
    %c3 = arith.constant 3 : index
    %c0_18 = arith.constant 0 : index
    %37 = vector.load %arg7[%c3, %c0_18] : memref<5x256xf32, #tpu.memory_space<vmem>>, vector<1x200xf32>
    %38 = vector.broadcast %37 : vector<1x200xf32> to vector<128x200xf32>
    %39 = arith.addf %36, %38 : vector<128x200xf32>
    %cst_19 = arith.constant 0.000000e+00 : f32
    %40 = vector.broadcast %cst_19 : f32 to vector<128x200xf32>
    %41 = arith.maximumf %39, %40 : vector<128x200xf32>
    %c0_20 = arith.constant 0 : index
    %c0_21 = arith.constant 0 : index
    %42 = vector.load %arg6[%c0_20, %c0_21] : memref<1x200xbf16, #tpu.memory_space<vmem>>, vector<1x200xbf16>
    %43 = arith.truncf %41 : vector<128x200xf32> to vector<128x200xbf16>
    %cst_22 = arith.constant dense<0.000000e+00> : vector<1x128xf32>
    %44 = tpu.matmul %42, %43, %cst_22 {dimension_numbers = #tpu.dot_dimension_numbers<[1], [1], [0], [0], [0, 0, 1, 0], [], []>} : vector<1x200xbf16>, vector<128x200xbf16>, vector<1x128xf32> -> vector<1x128xf32>
    %c4 = arith.constant 4 : index
    %c0_23 = arith.constant 0 : index
    %45 = vector.load %arg7[%c4, %c0_23] : memref<5x256xf32, #tpu.memory_space<vmem>>, vector<1x1xf32>
    %46 = vector.broadcast %45 : vector<1x1xf32> to vector<1x128xf32>
    %47 = arith.addf %44, %46 : vector<1x128xf32>
    %c0_24 = arith.constant 0 : index
    %c0_25 = arith.constant 0 : index
    %48 = vector.load %arg8[%c0_24, %c0_25] : memref<1x128xf32, #tpu.memory_space<vmem>>, vector<1x128xf32>
    tpu.vector_store %arg8[%c0_24, %c0_25], %47 {strides = array<i32>} : memref<1x128xf32, #tpu.memory_space<vmem>>, vector<1x128xf32>,
    return
  }
  func.func @transform_0(%arg0: i32) -> (i32, i32) {
    %c0_i32 = arith.constant 0 : i32
    %c0_i32_0 = arith.constant 0 : i32
    return %arg0, %c0_i32 : i32, i32
  }
  func.func @transform_1(%arg0: i32) -> (i32, i32) {
    %c0_i32 = arith.constant 0 : i32
    %c0_i32_0 = arith.constant 0 : i32
    %c0_i32_1 = arith.constant 0 : i32
    return %c0_i32, %c0_i32_0 : i32, i32
  }
  func.func @transform_2(%arg0: i32) -> (i32, i32) {
    %c0_i32 = arith.constant 0 : i32
    %c0_i32_0 = arith.constant 0 : i32
    %c0_i32_1 = arith.constant 0 : i32
    return %c0_i32, %c0_i32_0 : i32, i32
  }
  func.func @transform_3(%arg0: i32) -> (i32, i32) {
    %c0_i32 = arith.constant 0 : i32
    %c0_i32_0 = arith.constant 0 : i32
    %c0_i32_1 = arith.constant 0 : i32
    return %c0_i32, %c0_i32_0 : i32, i32
  }
  func.func @transform_4(%arg0: i32) -> (i32, i32) {
    %c0_i32 = arith.constant 0 : i32
    %c0_i32_0 = arith.constant 0 : i32
    %c0_i32_1 = arith.constant 0 : i32
    return %c0_i32, %c0_i32_0 : i32, i32
  }
  func.func @transform_5(%arg0: i32) -> (i32, i32) {
    %c0_i32 = arith.constant 0 : i32
    %c0_i32_0 = arith.constant 0 : i32
    %c0_i32_1 = arith.constant 0 : i32
    return %c0_i32, %c0_i32_0 : i32, i32
  }
  func.func @transform_6(%arg0: i32) -> (i32, i32) {
    %c0_i32 = arith.constant 0 : i32
    %c0_i32_0 = arith.constant 0 : i32
    %c0_i32_1 = arith.constant 0 : i32
    return %c0_i32, %c0_i32_0 : i32, i32
  }
  func.func @transform_7(%arg0: i32) -> (i32, i32) {
    %c0_i32 = arith.constant 0 : i32
    %c0_i32_0 = arith.constant 0 : i32
    return %arg0, %c0_i32 : i32, i32
  }
}

</mosaic_0001>

<llo_original>
// kernel: mlp_forward.1
$region0: #{mlp_forward.1}
  #allocation0 [shape = 'u32[]', space=smem, size = 0x4, offset = 0x4, fixed_abs, tag = 'smem constant byte address 0x4 - core index']
  #allocation1 [shape = 'u32[144,128]{1,0:T(1,128)}', space=vmem, size = 0x12000, scoped, tag = 'internal scratch']
  %s0 = inlined_call_operand.vmem [shape: f32[128,2], index: 0, kind: input, shape index: {}]
  %s1 = inlined_call_operand.vmem [shape: f32[2,32], index: 1, kind: input, shape index: {}]
  %s2 = inlined_call_operand.vmem [shape: bf16[32,32], index: 2, kind: input, shape index: {}]
  %s3 = inlined_call_operand.vmem [shape: bf16[32,32], index: 3, kind: input, shape index: {}]
  %s4 = inlined_call_operand.vmem [shape: bf16[32,200], index: 4, kind: input, shape index: {}]
  %s5 = inlined_call_operand.vmem [shape: bf16[1,200], index: 5, kind: input, shape index: {}]
  %s6 = inlined_call_operand.vmem [shape: f32[5,256], index: 6, kind: input, shape index: {}]
  %s7 = inlined_call_operand.vmem [shape: f32[1,128], index: 7, kind: output, shape index: {}]
  %s8 = sld [smem:[#allocation0]]
  $region38: #{mlp_forward.1} parent=0
    _
  %s10 = ssub.s32 1, %s8
  %s11 = scalar_select 0, %s10, %s8
  // Predicated region
  $region2: #{mlp_forward.1} parent=0 // pred_check
    _
  $region3: #{mlp_forward.1} parent=0 // pred_check_branch
    %13 = sbr.rel (0) target = $region5
  $region4: #{mlp_forward.1} parent=0 // pred_region
    _
  $region5: #{mlp_forward.1} parent=0 // pred_fallthru
    _
  // Predicated region
  $region6: #{mlp_forward.1} parent=0 // pred_check
    _
  $region7: #{mlp_forward.1} parent=0 // pred_check_branch
    %15 = sbr.rel (0) target = $region9
  $region8: #{mlp_forward.1} parent=0 // pred_region
    _
  $region9: #{mlp_forward.1} parent=0 // pred_fallthru
    _
  // Predicated region
  $region10: #{mlp_forward.1} parent=0 // pred_check
    _
  $region11: #{mlp_forward.1} parent=0 // pred_check_branch
    %17 = sbr.rel (0) target = $region13
  $region12: #{mlp_forward.1} parent=0 // pred_region
    _
  $region13: #{mlp_forward.1} parent=0 // pred_fallthru
    _
  // Predicated region
  $region14: #{mlp_forward.1} parent=0 // pred_check
    _
  $region15: #{mlp_forward.1} parent=0 // pred_check_branch
    %19 = sbr.rel (0) target = $region17
  $region16: #{mlp_forward.1} parent=0 // pred_region
    _
  $region17: #{mlp_forward.1} parent=0 // pred_fallthru
    _
  // Predicated region
  $region18: #{mlp_forward.1} parent=0 // pred_check
    _
  $region19: #{mlp_forward.1} parent=0 // pred_check_branch
    %21 = sbr.rel (0) target = $region21
  $region20: #{mlp_forward.1} parent=0 // pred_region
    _
  $region21: #{mlp_forward.1} parent=0 // pred_fallthru
    _
  // Predicated region
  $region22: #{mlp_forward.1} parent=0 // pred_check
    _
  $region23: #{mlp_forward.1} parent=0 // pred_check_branch
    %23 = sbr.rel (0) target = $region25
  $region24: #{mlp_forward.1} parent=0 // pred_region
    _
  $region25: #{mlp_forward.1} parent=0 // pred_fallthru
    _
  // Predicated region
  $region26: #{mlp_forward.1} parent=0 // pred_check
    _
  $region27: #{mlp_forward.1} parent=0 // pred_check_branch
    %25 = sbr.rel (0) target = $region29
  $region28: #{mlp_forward.1} parent=0 // pred_region
    _
  $region29: #{mlp_forward.1} parent=0 // pred_fallthru
    _
  %v27 = vld [vmem:[%s0] sm:$0xff]
  %v28 = vld [vmem:[%s0 + $0x8] sm:$0xff]
  %v29 = vld [vmem:[%s0 + $0x10] sm:$0xff]
  %v30 = vld [vmem:[%s0 + $0x18] sm:$0xff]
  %v31 = vld [vmem:[%s0 + $0x20] sm:$0xff]
  %v32 = vld [vmem:[%s0 + $0x28] sm:$0xff]
  %v33 = vld [vmem:[%s0 + $0x30] sm:$0xff]
  %v34 = vld [vmem:[%s0 + $0x38] sm:$0xff]
  %v35 = vld [vmem:[%s0 + $0x40] sm:$0xff]
  %v36 = vld [vmem:[%s0 + $0x48] sm:$0xff]
  %v37 = vld [vmem:[%s0 + $0x50] sm:$0xff]
  %v38 = vld [vmem:[%s0 + $0x58] sm:$0xff]
  %v39 = vld [vmem:[%s0 + $0x60] sm:$0xff]
  %v40 = vld [vmem:[%s0 + $0x68] sm:$0xff]
  %v41 = vld [vmem:[%s0 + $0x70] sm:$0xff]
  %v42 = vld [vmem:[%s0 + $0x78] sm:$0xff]
  %v43 = vld [vmem:[%s1] sm:$0x3]
  %45 = vset.pattern.permute.xlu0 0
  %46 = vperm.xlu0 %45, %v27
  %v47 = vpop.permute.xlu0 %46
  %50 = vset.pattern.permute.xlu0 0
  %51 = vperm.xlu0 %50, %v28
  %v52 = vpop.permute.xlu0 %51
  %55 = vset.pattern.permute.xlu0 0
  %56 = vperm.xlu0 %55, %v29
  %v57 = vpop.permute.xlu0 %56
  %60 = vset.pattern.permute.xlu0 0
  %61 = vperm.xlu0 %60, %v30
  %v62 = vpop.permute.xlu0 %61
  %65 = vset.pattern.permute.xlu0 0
  %66 = vperm.xlu0 %65, %v31
  %v67 = vpop.permute.xlu0 %66
  %70 = vset.pattern.permute.xlu0 0
  %71 = vperm.xlu0 %70, %v32
  %v72 = vpop.permute.xlu0 %71
  %75 = vset.pattern.permute.xlu0 0
  %76 = vperm.xlu0 %75, %v33
  %v77 = vpop.permute.xlu0 %76
  %80 = vset.pattern.permute.xlu0 0
  %81 = vperm.xlu0 %80, %v34
  %v82 = vpop.permute.xlu0 %81
  %85 = vset.pattern.permute.xlu0 0
  %86 = vperm.xlu0 %85, %v35
  %v87 = vpop.permute.xlu0 %86
  %90 = vset.pattern.permute.xlu0 0
  %91 = vperm.xlu0 %90, %v36
  %v92 = vpop.permute.xlu0 %91
  %95 = vset.pattern.permute.xlu0 0
  %96 = vperm.xlu0 %95, %v37
  %v97 = vpop.permute.xlu0 %96
  %100 = vset.pattern.permute.xlu0 0
  %101 = vperm.xlu0 %100, %v38
  %v102 = vpop.permute.xlu0 %101
  %105 = vset.pattern.permute.xlu0 0
  %106 = vperm.xlu0 %105, %v39
  %v107 = vpop.permute.xlu0 %106
  %110 = vset.pattern.permute.xlu0 0
  %111 = vperm.xlu0 %110, %v40
  %v112 = vpop.permute.xlu0 %111
  %115 = vset.pattern.permute.xlu0 0
  %116 = vperm.xlu0 %115, %v41
  %v117 = vpop.permute.xlu0 %116
  %120 = vset.pattern.permute.xlu0 0
  %121 = vperm.xlu0 %120, %v42
  %v122 = vpop.permute.xlu0 %121
  %v124 = vlaneseq
  %v125 = vshrl.u32 %v124, 7
  %v126 = vsub.s32 0, %v125
  %v127 = vrot.slane %v43, %v126
  %v128 = vmul.f32 %v47, %v127
  %v129 = vmul.f32 %v52, %v127
  %v130 = vmul.f32 %v57, %v127
  %v131 = vmul.f32 %v62, %v127
  %v132 = vmul.f32 %v67, %v127
  %v133 = vmul.f32 %v72, %v127
  %v134 = vmul.f32 %v77, %v127
  %v135 = vmul.f32 %v82, %v127
  %v136 = vmul.f32 %v87, %v127
  %v137 = vmul.f32 %v92, %v127
  %v138 = vmul.f32 %v97, %v127
  %v139 = vmul.f32 %v102, %v127
  %v140 = vmul.f32 %v107, %v127
  %v141 = vmul.f32 %v112, %v127
  %v142 = vmul.f32 %v117, %v127
  %v143 = vmul.f32 %v122, %v127
  %144 = vset.pattern.permute.xlu0 1
  %145 = vperm.xlu0 %144, %v27
  %v146 = vpop.permute.xlu0 %145
  %148 = vset.pattern.permute.xlu0 1
  %149 = vperm.xlu0 %148, %v28
  %v150 = vpop.permute.xlu0 %149
  %152 = vset.pattern.permute.xlu0 1
  %153 = vperm.xlu0 %152, %v29
  %v154 = vpop.permute.xlu0 %153
  %156 = vset.pattern.permute.xlu0 1
  %157 = vperm.xlu0 %156, %v30
  %v158 = vpop.permute.xlu0 %157
  %160 = vset.pattern.permute.xlu0 1
  %161 = vperm.xlu0 %160, %v31
  %v162 = vpop.permute.xlu0 %161
  %164 = vset.pattern.permute.xlu0 1
  %165 = vperm.xlu0 %164, %v32
  %v166 = vpop.permute.xlu0 %165
  %168 = vset.pattern.permute.xlu0 1
  %169 = vperm.xlu0 %168, %v33
  %v170 = vpop.permute.xlu0 %169
  %172 = vset.pattern.permute.xlu0 1
  %173 = vperm.xlu0 %172, %v34
  %v174 = vpop.permute.xlu0 %173
  %176 = vset.pattern.permute.xlu0 1
  %177 = vperm.xlu0 %176, %v35
  %v178 = vpop.permute.xlu0 %177
  %180 = vset.pattern.permute.xlu0 1
  %181 = vperm.xlu0 %180, %v36
  %v182 = vpop.permute.xlu0 %181
  %184 = vset.pattern.permute.xlu0 1
  %185 = vperm.xlu0 %184, %v37
  %v186 = vpop.permute.xlu0 %185
  %188 = vset.pattern.permute.xlu0 1
  %189 = vperm.xlu0 %188, %v38
  %v190 = vpop.permute.xlu0 %189
  %192 = vset.pattern.permute.xlu0 1
  %193 = vperm.xlu0 %192, %v39
  %v194 = vpop.permute.xlu0 %193
  %196 = vset.pattern.permute.xlu0 1
  %197 = vperm.xlu0 %196, %v40
  %v198 = vpop.permute.xlu0 %197
  %200 = vset.pattern.permute.xlu0 1
  %201 = vperm.xlu0 %200, %v41
  %v202 = vpop.permute.xlu0 %201
  %204 = vset.pattern.permute.xlu0 1
  %205 = vperm.xlu0 %204, %v42
  %v206 = vpop.permute.xlu0 %205
  %v208 = vlaneseq
  %v209 = vshrl.u32 %v208, 7
  %v210 = vsub.s32 1, %v209
  %v211 = vrot.slane %v43, %v210
  %v212 = vmul.f32 %v146, %v211
  %v213 = vmul.f32 %v150, %v211
  %v214 = vmul.f32 %v154, %v211
  %v215 = vmul.f32 %v158, %v211
  %v216 = vmul.f32 %v162, %v211
  %v217 = vmul.f32 %v166, %v211
  %v218 = vmul.f32 %v170, %v211
  %v219 = vmul.f32 %v174, %v211
  %v220 = vmul.f32 %v178, %v211
  %v221 = vmul.f32 %v182, %v211
  %v222 = vmul.f32 %v186, %v211
  %v223 = vmul.f32 %v190, %v211
  %v224 = vmul.f32 %v194, %v211
  %v225 = vmul.f32 %v198, %v211
  %v226 = vmul.f32 %v202, %v211
  %v227 = vmul.f32 %v206, %v211
  %v228 = vadd.f32 %v128, %v212
  %v229 = vadd.f32 %v129, %v213
  %v230 = vadd.f32 %v130, %v214
  %v231 = vadd.f32 %v131, %v215
  %v232 = vadd.f32 %v132, %v216
  %v233 = vadd.f32 %v133, %v217
  %v234 = vadd.f32 %v134, %v218
  %v235 = vadd.f32 %v135, %v219
  %v236 = vadd.f32 %v136, %v220
  %v237 = vadd.f32 %v137, %v221
  %v238 = vadd.f32 %v138, %v222
  %v239 = vadd.f32 %v139, %v223
  %v240 = vadd.f32 %v140, %v224
  %v241 = vadd.f32 %v141, %v225
  %v242 = vadd.f32 %v142, %v226
  %v243 = vadd.f32 %v143, %v227
  %v244 = vld [vmem:[%s6] ss:$0 sm:$0xff]
  %v245 = vadd.f32 %v228, %v244
  %v246 = vadd.f32 %v229, %v244
  %v247 = vadd.f32 %v230, %v244
  %v248 = vadd.f32 %v231, %v244
  %v249 = vadd.f32 %v232, %v244
  %v250 = vadd.f32 %v233, %v244
  %v251 = vadd.f32 %v234, %v244
  %v252 = vadd.f32 %v235, %v244
  %v253 = vadd.f32 %v236, %v244
  %v254 = vadd.f32 %v237, %v244
  %v255 = vadd.f32 %v238, %v244
  %v256 = vadd.f32 %v239, %v244
  %v257 = vadd.f32 %v240, %v244
  %v258 = vadd.f32 %v241, %v244
  %v259 = vadd.f32 %v242, %v244
  %v260 = vadd.f32 %v243, %v244
  %v261 = vmax.f32 %v245, 0.0
  %v262 = vmax.f32 %v246, 0.0
  %v263 = vmax.f32 %v247, 0.0
  %v264 = vmax.f32 %v248, 0.0
  %v265 = vmax.f32 %v249, 0.0
  %v266 = vmax.f32 %v250, 0.0
  %v267 = vmax.f32 %v251, 0.0
  %v268 = vmax.f32 %v252, 0.0
  %v269 = vmax.f32 %v253, 0.0
  %v270 = vmax.f32 %v254, 0.0
  %v271 = vmax.f32 %v255, 0.0
  %v272 = vmax.f32 %v256, 0.0
  %v273 = vmax.f32 %v257, 0.0
  %v274 = vmax.f32 %v258, 0.0
  %v275 = vmax.f32 %v259, 0.0
  %v276 = vmax.f32 %v260, 0.0
  %v277 = vpack.c.bf16 %v262, %v261
  %v278 = vpack.c.bf16 %v264, %v263
  %v279 = vpack.c.bf16 %v266, %v265
  %v280 = vpack.c.bf16 %v268, %v267
  %v281 = vpack.c.bf16 %v270, %v269
  %v282 = vpack.c.bf16 %v272, %v271
  %v283 = vpack.c.bf16 %v274, %v273
  %v284 = vpack.c.bf16 %v276, %v275
  %v285 = vld [vmem:[%s2] sm:$0xf]
  %v286 = vld [vmem:[%s2 + $0x4] sm:$0xf]
  %v287 = vld [vmem:[%s2 + $0x8] sm:$0xf]
  %v288 = vld [vmem:[%s2 + $0xc] sm:$0xf]
  %v289 = vld [vmem:[%s6 + $0x1] ss:$0 sm:$0xff]
  %v294 = vunpack.c.l.b16 %v285
  %v295 = vunpack.c.l.b16 %v286
  %v296 = vunpack.c.l.b16 %v287
  %v297 = vunpack.c.l.b16 %v288
  %v298 = vpack.c.b16 %v295, %v294
  %v299 = vpack.c.b16 %v297, %v296
  %vm302 = vcmask 261120
  %v304 = vsel %vm302, %v277, 0
  %v307 = vsel %vm302, %v278, 0
  %v310 = vsel %vm302, %v279, 0
  %v313 = vsel %vm302, %v280, 0
  %v316 = vsel %vm302, %v281, 0
  %v319 = vsel %vm302, %v282, 0
  %v322 = vsel %vm302, %v283, 0
  %v325 = vsel %vm302, %v284, 0
  %327 = vmatprep.subr.bf16.mxu0 0
  %328 = vmatpush1.bf16.msra.mxu0 %v298
  %329 = vmatprep.subr.bf16.mxu0 0
  %330 = vmatpush1.bf16.msra.mxu0 %v299
  %331 = vmatprep.subr.bf16.mxu0 0
  %332 = vmatpush1.bf16.msra.mxu0 0
  %333 = vmatprep.subr.bf16.mxu0 0
  %334 = vmatpush1.bf16.msra.mxu0 0
  %335 = vmatprep.subr.bf16.mxu0 0
  %336 = vmatpush1.bf16.msra.mxu0 0
  %337 = vmatprep.subr.bf16.mxu0 0
  %338 = vmatpush1.bf16.msra.mxu0 0
  %339 = vmatprep.subr.bf16.mxu0 0
  %340 = vmatpush1.bf16.msra.mxu0 0
  %341 = vmatprep.subr.bf16.mxu0 0
  %342 = vmatpush1.bf16.msra.mxu0 0
  %343 = vmatprep.subr.bf16.mxu0 0
  %344 = vmatpush1.bf16.msra.mxu0 0
  %345 = vmatprep.subr.bf16.mxu0 0
  %346 = vmatpush1.bf16.msra.mxu0 0
  %347 = vmatprep.subr.bf16.mxu0 0
  %348 = vmatpush1.bf16.msra.mxu0 0
  %349 = vmatprep.subr.bf16.mxu0 0
  %350 = vmatpush1.bf16.msra.mxu0 0
  %351 = vmatprep.subr.bf16.mxu0 0
  %352 = vmatpush1.bf16.msra.mxu0 0
  %353 = vmatprep.subr.bf16.mxu0 0
  %354 = vmatpush1.bf16.msra.mxu0 0
  %355 = vmatprep.subr.bf16.mxu0 0
  %356 = vmatpush1.bf16.msra.mxu0 0
  %357 = vmatprep.subr.bf16.mxu0 0
  %358 = vmatpush1.bf16.msra.mxu0 0
  %359 = vmatprep.mubr.bf16.mxu0 0
  %360 = vmatmul.mubr.bf16.gmra.mrb[0].mxu0 %v304
  %v361 = vpop.f32.mrb[0].mxu0
  %v362 = vadd.f32 %v289, %v361
  %v363 = vpop.f32.mrb[0].mxu0
  %v364 = vpop.f32.mrb[0].mxu0
  %v365 = vadd.f32 %v289, %v364
  %v366 = vpop.f32.mrb[0].mxu0
  %367 = vmatprep.mubr.bf16.mxu0 0
  %368 = vmatmul.mubr.bf16.gmra.mrb[0].mxu0 %v307
  %v369 = vpop.f32.mrb[0].mxu0
  %v370 = vadd.f32 %v289, %v369
  %v371 = vpop.f32.mrb[0].mxu0
  %v372 = vpop.f32.mrb[0].mxu0
  %v373 = vadd.f32 %v289, %v372
  %v374 = vpop.f32.mrb[0].mxu0
  %375 = vmatprep.mubr.bf16.mxu0 0
  %376 = vmatmul.mubr.bf16.gmra.mrb[0].mxu0 %v310
  %v377 = vpop.f32.mrb[0].mxu0
  %v378 = vadd.f32 %v289, %v377
  %v379 = vpop.f32.mrb[0].mxu0
  %v380 = vpop.f32.mrb[0].mxu0
  %v381 = vadd.f32 %v289, %v380
  %v382 = vpop.f32.mrb[0].mxu0
  %383 = vmatprep.mubr.bf16.mxu0 0
  %384 = vmatmul.mubr.bf16.gmra.mrb[0].mxu0 %v313
  %v385 = vpop.f32.mrb[0].mxu0
  %v386 = vadd.f32 %v289, %v385
  %v387 = vpop.f32.mrb[0].mxu0
  %v388 = vpop.f32.mrb[0].mxu0
  %v389 = vadd.f32 %v289, %v388
  %v390 = vpop.f32.mrb[0].mxu0
  %391 = vmatprep.mubr.bf16.mxu0 0
  %392 = vmatmul.mubr.bf16.gmra.mrb[0].mxu0 %v316
  %v393 = vpop.f32.mrb[0].mxu0
  %v394 = vadd.f32 %v289, %v393
  %v395 = vpop.f32.mrb[0].mxu0
  %v396 = vpop.f32.mrb[0].mxu0
  %v397 = vadd.f32 %v289, %v396
  %v398 = vpop.f32.mrb[0].mxu0
  %399 = vmatprep.mubr.bf16.mxu0 0
  %400 = vmatmul.mubr.bf16.gmra.mrb[0].mxu0 %v319
  %v401 = vpop.f32.mrb[0].mxu0
  %v402 = vadd.f32 %v289, %v401
  %v403 = vpop.f32.mrb[0].mxu0
  %v404 = vpop.f32.mrb[0].mxu0
  %v405 = vadd.f32 %v289, %v404
  %v406 = vpop.f32.mrb[0].mxu0
  %407 = vmatprep.mubr.bf16.mxu0 0
  %408 = vmatmul.mubr.bf16.gmra.mrb[0].mxu0 %v322
  %v409 = vpop.f32.mrb[0].mxu0
  %v410 = vadd.f32 %v289, %v409
  %v411 = vpop.f32.mrb[0].mxu0
  %v412 = vpop.f32.mrb[0].mxu0
  %v413 = vadd.f32 %v289, %v412
  %v414 = vpop.f32.mrb[0].mxu0
  %415 = vmatprep.mubr.bf16.mxu0 0
  %416 = vmatmul.mubr.bf16.gmra.mrb[0].mxu0 %v325
  %v417 = vpop.f32.mrb[0].mxu0
  %v418 = vadd.f32 %v289, %v417
  %v419 = vpop.f32.mrb[0].mxu0
  %v420 = vpop.f32.mrb[0].mxu0
  %v421 = vadd.f32 %v289, %v420
  %v422 = vpop.f32.mrb[0].mxu0
  %423 = vdwg.mxu0
  %v424 = vmax.f32 %v362, 0.0
  %v425 = vmax.f32 %v365, 0.0
  %v426 = vmax.f32 %v370, 0.0
  %v427 = vmax.f32 %v373, 0.0
  %v428 = vmax.f32 %v378, 0.0
  %v429 = vmax.f32 %v381, 0.0
  %v430 = vmax.f32 %v386, 0.0
  %v431 = vmax.f32 %v389, 0.0
  %v432 = vmax.f32 %v394, 0.0
  %v433 = vmax.f32 %v397, 0.0
  %v434 = vmax.f32 %v402, 0.0
  %v435 = vmax.f32 %v405, 0.0
  %v436 = vmax.f32 %v410, 0.0
  %v437 = vmax.f32 %v413, 0.0
  %v438 = vmax.f32 %v418, 0.0
  %v439 = vmax.f32 %v421, 0.0
  %v440 = vpack.c.bf16 %v425, %v424
  %v441 = vpack.c.bf16 %v427, %v426
  %v442 = vpack.c.bf16 %v429, %v428
  %v443 = vpack.c.bf16 %v431, %v430
  %v444 = vpack.c.bf16 %v433, %v432
  %v445 = vpack.c.bf16 %v435, %v434
  %v446 = vpack.c.bf16 %v437, %v436
  %v447 = vpack.c.bf16 %v439, %v438
  %v448 = vld [vmem:[%s3] sm:$0xf]
  %v449 = vld [vmem:[%s3 + $0x4] sm:$0xf]
  %v450 = vld [vmem:[%s3 + $0x8] sm:$0xf]
  %v451 = vld [vmem:[%s3 + $0xc] sm:$0xf]
  %v452 = vld [vmem:[%s6 + $0x2] ss:$0 sm:$0xff]
  %v457 = vunpack.c.l.b16 %v448
  %v458 = vunpack.c.l.b16 %v449
  %v459 = vunpack.c.l.b16 %v450
  %v460 = vunpack.c.l.b16 %v451
  %v461 = vpack.c.b16 %v458, %v457
  %v462 = vpack.c.b16 %v460, %v459
  %v466 = vsel %vm302, %v440, 0
  %v469 = vsel %vm302, %v441, 0
  %v472 = vsel %vm302, %v442, 0
  %v475 = vsel %vm302, %v443, 0
  %v478 = vsel %vm302, %v444, 0
  %v481 = vsel %vm302, %v445, 0
  %v484 = vsel %vm302, %v446, 0
  %v487 = vsel %vm302, %v447, 0
  %489 = vmatprep.subr.bf16.mxu0 0
  %490 = vmatpush1.bf16.msra.mxu0 %v461
  %491 = vmatprep.subr.bf16.mxu0 0
  %492 = vmatpush1.bf16.msra.mxu0 %v462
  %493 = vmatprep.subr.bf16.mxu0 0
  %494 = vmatpush1.bf16.msra.mxu0 0
  %495 = vmatprep.subr.bf16.mxu0 0
  %496 = vmatpush1.bf16.msra.mxu0 0
  %497 = vmatprep.subr.bf16.mxu0 0
  %498 = vmatpush1.bf16.msra.mxu0 0
  %499 = vmatprep.subr.bf16.mxu0 0
  %500 = vmatpush1.bf16.msra.mxu0 0
  %501 = vmatprep.subr.bf16.mxu0 0
  %502 = vmatpush1.bf16.msra.mxu0 0
  %503 = vmatprep.subr.bf16.mxu0 0
  %504 = vmatpush1.bf16.msra.mxu0 0
  %505 = vmatprep.subr.bf16.mxu0 0
  %506 = vmatpush1.bf16.msra.mxu0 0
  %507 = vmatprep.subr.bf16.mxu0 0
  %508 = vmatpush1.bf16.msra.mxu0 0
  %509 = vmatprep.subr.bf16.mxu0 0
  %510 = vmatpush1.bf16.msra.mxu0 0
  %511 = vmatprep.subr.bf16.mxu0 0
  %512 = vmatpush1.bf16.msra.mxu0 0
  %513 = vmatprep.subr.bf16.mxu0 0
  %514 = vmatpush1.bf16.msra.mxu0 0
  %515 = vmatprep.subr.bf16.mxu0 0
  %516 = vmatpush1.bf16.msra.mxu0 0
  %517 = vmatprep.subr.bf16.mxu0 0
  %518 = vmatpush1.bf16.msra.mxu0 0
  %519 = vmatprep.subr.bf16.mxu0 0
  %520 = vmatpush1.bf16.msra.mxu0 0
  %521 = vmatprep.mubr.bf16.mxu0 0
  %522 = vmatmul.mubr.bf16.gmra.mrb[0].mxu0 %v466
  %v523 = vpop.f32.mrb[0].mxu0
  %v524 = vadd.f32 %v452, %v523
  %v525 = vpop.f32.mrb[0].mxu0
  %v526 = vpop.f32.mrb[0].mxu0
  %v527 = vadd.f32 %v452, %v526
  %v528 = vpop.f32.mrb[0].mxu0
  %529 = vmatprep.mubr.bf16.mxu0 0
  %530 = vmatmul.mubr.bf16.gmra.mrb[0].mxu0 %v469
  %v531 = vpop.f32.mrb[0].mxu0
  %v532 = vadd.f32 %v452, %v531
  %v533 = vpop.f32.mrb[0].mxu0
  %v534 = vpop.f32.mrb[0].mxu0
  %v535 = vadd.f32 %v452, %v534
  %v536 = vpop.f32.mrb[0].mxu0
  %537 = vmatprep.mubr.bf16.mxu0 0
  %538 = vmatmul.mubr.bf16.gmra.mrb[0].mxu0 %v472
  %v539 = vpop.f32.mrb[0].mxu0
  %v540 = vadd.f32 %v452, %v539
  %v541 = vpop.f32.mrb[0].mxu0
  %v542 = vpop.f32.mrb[0].mxu0
  %v543 = vadd.f32 %v452, %v542
  %v544 = vpop.f32.mrb[0].mxu0
  %545 = vmatprep.mubr.bf16.mxu0 0
  %546 = vmatmul.mubr.bf16.gmra.mrb[0].mxu0 %v475
  %v547 = vpop.f32.mrb[0].mxu0
  %v548 = vadd.f32 %v452, %v547
  %v549 = vpop.f32.mrb[0].mxu0
  %v550 = vpop.f32.mrb[0].mxu0
  %v551 = vadd.f32 %v452, %v550
  %v552 = vpop.f32.mrb[0].mxu0
  %553 = vmatprep.mubr.bf16.mxu0 0
  %554 = vmatmul.mubr.bf16.gmra.mrb[0].mxu0 %v478
  %v555 = vpop.f32.mrb[0].mxu0
  %v556 = vadd.f32 %v452, %v555
  %v557 = vpop.f32.mrb[0].mxu0
  %v558 = vpop.f32.mrb[0].mxu0
  %v559 = vadd.f32 %v452, %v558
  %v560 = vpop.f32.mrb[0].mxu0
  %561 = vmatprep.mubr.bf16.mxu0 0
  %562 = vmatmul.mubr.bf16.gmra.mrb[0].mxu0 %v481
  %v563 = vpop.f32.mrb[0].mxu0
  %v564 = vadd.f32 %v452, %v563
  %v565 = vpop.f32.mrb[0].mxu0
  %v566 = vpop.f32.mrb[0].mxu0
  %v567 = vadd.f32 %v452, %v566
  %v568 = vpop.f32.mrb[0].mxu0
  %569 = vmatprep.mubr.bf16.mxu0 0
  %570 = vmatmul.mubr.bf16.gmra.mrb[0].mxu0 %v484
  %v571 = vpop.f32.mrb[0].mxu0
  %v572 = vadd.f32 %v452, %v571
  %v573 = vpop.f32.mrb[0].mxu0
  %v574 = vpop.f32.mrb[0].mxu0
  %v575 = vadd.f32 %v452, %v574
  %v576 = vpop.f32.mrb[0].mxu0
  %577 = vmatprep.mubr.bf16.mxu0 0
  %578 = vmatmul.mubr.bf16.gmra.mrb[0].mxu0 %v487
  %v579 = vpop.f32.mrb[0].mxu0
  %v580 = vadd.f32 %v452, %v579
  %v581 = vpop.f32.mrb[0].mxu0
  %v582 = vpop.f32.mrb[0].mxu0
  %v583 = vadd.f32 %v452, %v582
  %v584 = vpop.f32.mrb[0].mxu0
  %585 = vdwg.mxu0
  %v586 = vmax.f32 %v524, 0.0
  %v587 = vmax.f32 %v527, 0.0
  %v588 = vmax.f32 %v532, 0.0
  %v589 = vmax.f32 %v535, 0.0
  %v590 = vmax.f32 %v540, 0.0
  %v591 = vmax.f32 %v543, 0.0
  %v592 = vmax.f32 %v548, 0.0
  %v593 = vmax.f32 %v551, 0.0
  %v594 = vmax.f32 %v556, 0.0
  %v595 = vmax.f32 %v559, 0.0
  %v596 = vmax.f32 %v564, 0.0
  %v597 = vmax.f32 %v567, 0.0
  %v598 = vmax.f32 %v572, 0.0
  %v599 = vmax.f32 %v575, 0.0
  %v600 = vmax.f32 %v580, 0.0
  %v601 = vmax.f32 %v583, 0.0
  %v602 = vpack.c.bf16 %v587, %v586
  %v603 = vpack.c.bf16 %v589, %v588
  %v604 = vpack.c.bf16 %v591, %v590
  %v605 = vpack.c.bf16 %v593, %v592
  %v606 = vpack.c.bf16 %v595, %v594
  %v607 = vpack.c.bf16 %v597, %v596
  %v608 = vpack.c.bf16 %v599, %v598
  %v609 = vpack.c.bf16 %v601, %v600
  %v610 = vld [vmem:[%s4] sm:$0xff]
  %v611 = vld [vmem:[%s4 + $0x8] sm:$0xff]
  %v612 = vld [vmem:[%s4 + $0x10] sm:$0xff]
  %v613 = vld [vmem:[%s4 + $0x18] sm:$0xff]
  %s614 = scalar_lea.vmem %s6, 3
  %v615 = vld [vmem:[%s614] ss:$8 sm:$0x3]
  %v617 = vlaneseq
  %v618 = vshrl.u32 %v617, 7
  %v619 = vsub.s32 0, %v618
  %v620 = vrot.slane %v615, %v619
  %v621 = vlaneseq
  %v622 = vshrl.u32 %v621, 7
  %v623 = vsub.s32 1, %v622
  %v624 = vrot.slane %v615, %v623
  %v631 = vunpack.c.l.b16 %v610
  %v632 = vunpack.c.h.b16 %v610
  %v633 = vunpack.c.l.b16 %v611
  %v634 = vunpack.c.h.b16 %v611
  %v635 = vunpack.c.l.b16 %v612
  %v636 = vunpack.c.h.b16 %v612
  %v637 = vunpack.c.l.b16 %v613
  %v638 = vunpack.c.h.b16 %v613
  %v639 = vpack.c.b16 %v633, %v631
  %v640 = vpack.c.b16 %v634, %v632
  %v641 = vpack.c.b16 %v637, %v635
  %v642 = vpack.c.b16 %v638, %v636
  %v648 = vsel %vm302, %v602, 0
  %v651 = vsel %vm302, %v603, 0
  %v654 = vsel %vm302, %v604, 0
  %v657 = vsel %vm302, %v605, 0
  %v660 = vsel %vm302, %v606, 0
  %v663 = vsel %vm302, %v607, 0
  %v666 = vsel %vm302, %v608, 0
  %v669 = vsel %vm302, %v609, 0
  %671 = vmatprep.subr.bf16.mxu0 %v640
  %672 = vmatpush1.bf16.msra.mxu0 %v639
  %673 = vmatprep.subr.bf16.mxu0 %v642
  %674 = vmatpush1.bf16.msra.mxu0 %v641
  %675 = vmatprep.subr.bf16.mxu0 0
  %676 = vmatpush1.bf16.msra.mxu0 0
  %677 = vmatprep.subr.bf16.mxu0 0
  %678 = vmatpush1.bf16.msra.mxu0 0
  %679 = vmatprep.subr.bf16.mxu0 0
  %680 = vmatpush1.bf16.msra.mxu0 0
  %681 = vmatprep.subr.bf16.mxu0 0
  %682 = vmatpush1.bf16.msra.mxu0 0
  %683 = vmatprep.subr.bf16.mxu0 0
  %684 = vmatpush1.bf16.msra.mxu0 0
  %685 = vmatprep.subr.bf16.mxu0 0
  %686 = vmatpush1.bf16.msra.mxu0 0
  %687 = vmatprep.subr.bf16.mxu0 0
  %688 = vmatpush1.bf16.msra.mxu0 0
  %689 = vmatprep.subr.bf16.mxu0 0
  %690 = vmatpush1.bf16.msra.mxu0 0
  %691 = vmatprep.subr.bf16.mxu0 0
  %692 = vmatpush1.bf16.msra.mxu0 0
  %693 = vmatprep.subr.bf16.mxu0 0
  %694 = vmatpush1.bf16.msra.mxu0 0
  %695 = vmatprep.subr.bf16.mxu0 0
  %696 = vmatpush1.bf16.msra.mxu0 0
  %697 = vmatprep.subr.bf16.mxu0 0
  %698 = vmatpush1.bf16.msra.mxu0 0
  %699 = vmatprep.subr.bf16.mxu0 0
  %700 = vmatpush1.bf16.msra.mxu0 0
  %701 = vmatprep.subr.bf16.mxu0 0
  %702 = vmatpush1.bf16.msra.mxu0 0
  %703 = vmatprep.mubr.bf16.mxu0 0
  %704 = vmatmul.mubr.bf16.gmra.mrb[0].mxu0 %v648
  %v705 = vpop.f32.mrb[0].mxu0
  %v706 = vadd.f32 %v620, %v705
  %v707 = vpop.f32.mrb[0].mxu0
  %v708 = vadd.f32 %v624, %v707
  %v709 = vpop.f32.mrb[0].mxu0
  %v710 = vadd.f32 %v620, %v709
  %v711 = vpop.f32.mrb[0].mxu0
  %v712 = vadd.f32 %v624, %v711
  %713 = vmatprep.mubr.bf16.mxu0 0
  %714 = vmatmul.mubr.bf16.gmra.mrb[0].mxu0 %v651
  %v715 = vpop.f32.mrb[0].mxu0
  %v716 = vadd.f32 %v620, %v715
  %v717 = vpop.f32.mrb[0].mxu0
  %v718 = vadd.f32 %v624, %v717
  %v719 = vpop.f32.mrb[0].mxu0
  %v720 = vadd.f32 %v620, %v719
  %v721 = vpop.f32.mrb[0].mxu0
  %v722 = vadd.f32 %v624, %v721
  %723 = vmatprep.mubr.bf16.mxu0 0
  %724 = vmatmul.mubr.bf16.gmra.mrb[0].mxu0 %v654
  %v725 = vpop.f32.mrb[0].mxu0
  %v726 = vadd.f32 %v620, %v725
  %v727 = vpop.f32.mrb[0].mxu0
  %v728 = vadd.f32 %v624, %v727
  %v729 = vpop.f32.mrb[0].mxu0
  %v730 = vadd.f32 %v620, %v729
  %v731 = vpop.f32.mrb[0].mxu0
  %v732 = vadd.f32 %v624, %v731
  %733 = vmatprep.mubr.bf16.mxu0 0
  %734 = vmatmul.mubr.bf16.gmra.mrb[0].mxu0 %v657
  %v735 = vpop.f32.mrb[0].mxu0
  %v736 = vadd.f32 %v620, %v735
  %v737 = vpop.f32.mrb[0].mxu0
  %v738 = vadd.f32 %v624, %v737
  %v739 = vpop.f32.mrb[0].mxu0
  %v740 = vadd.f32 %v620, %v739
  %v741 = vpop.f32.mrb[0].mxu0
  %v742 = vadd.f32 %v624, %v741
  %743 = vmatprep.mubr.bf16.mxu0 0
  %744 = vmatmul.mubr.bf16.gmra.mrb[0].mxu0 %v660
  %v745 = vpop.f32.mrb[0].mxu0
  %v746 = vadd.f32 %v620, %v745
  %v747 = vpop.f32.mrb[0].mxu0
  %v748 = vadd.f32 %v624, %v747
  %v749 = vpop.f32.mrb[0].mxu0
  %v750 = vadd.f32 %v620, %v749
  %v751 = vpop.f32.mrb[0].mxu0
  %v752 = vadd.f32 %v624, %v751
  %753 = vmatprep.mubr.bf16.mxu0 0
  %754 = vmatmul.mubr.bf16.gmra.mrb[0].mxu0 %v663
  %v755 = vpop.f32.mrb[0].mxu0
  %v756 = vadd.f32 %v620, %v755
  %v757 = vpop.f32.mrb[0].mxu0
  %v758 = vadd.f32 %v624, %v757
  %v759 = vpop.f32.mrb[0].mxu0
  %v760 = vadd.f32 %v620, %v759
  %v761 = vpop.f32.mrb[0].mxu0
  %v762 = vadd.f32 %v624, %v761
  %763 = vmatprep.mubr.bf16.mxu0 0
  %764 = vmatmul.mubr.bf16.gmra.mrb[0].mxu0 %v666
  %v765 = vpop.f32.mrb[0].mxu0
  %v766 = vadd.f32 %v620, %v765
  %v767 = vpop.f32.mrb[0].mxu0
  %v768 = vadd.f32 %v624, %v767
  %v769 = vpop.f32.mrb[0].mxu0
  %v770 = vadd.f32 %v620, %v769
  %v771 = vpop.f32.mrb[0].mxu0
  %v772 = vadd.f32 %v624, %v771
  %773 = vmatprep.mubr.bf16.mxu0 0
  %774 = vmatmul.mubr.bf16.gmra.mrb[0].mxu0 %v669
  %v775 = vpop.f32.mrb[0].mxu0
  %v776 = vadd.f32 %v620, %v775
  %v777 = vpop.f32.mrb[0].mxu0
  %v778 = vadd.f32 %v624, %v777
  %v779 = vpop.f32.mrb[0].mxu0
  %v780 = vadd.f32 %v620, %v779
  %v781 = vpop.f32.mrb[0].mxu0
  %v782 = vadd.f32 %v624, %v781
  %783 = vdwg.mxu0
  %v784 = vmax.f32 %v706, 0.0
  %v785 = vmax.f32 %v708, 0.0
  %v786 = vmax.f32 %v710, 0.0
  %v787 = vmax.f32 %v712, 0.0
  %v788 = vmax.f32 %v716, 0.0
  %v789 = vmax.f32 %v718, 0.0
  %v790 = vmax.f32 %v720, 0.0
  %v791 = vmax.f32 %v722, 0.0
  %v792 = vmax.f32 %v726, 0.0
  %v793 = vmax.f32 %v728, 0.0
  %v794 = vmax.f32 %v730, 0.0
  %v795 = vmax.f32 %v732, 0.0
  %v796 = vmax.f32 %v736, 0.0
  %v797 = vmax.f32 %v738, 0.0
  %v798 = vmax.f32 %v740, 0.0
  %v799 = vmax.f32 %v742, 0.0
  %v800 = vmax.f32 %v746, 0.0
  %v801 = vmax.f32 %v748, 0.0
  %v802 = vmax.f32 %v750, 0.0
  %v803 = vmax.f32 %v752, 0.0
  %v804 = vmax.f32 %v756, 0.0
  %v805 = vmax.f32 %v758, 0.0
  %v806 = vmax.f32 %v760, 0.0
  %v807 = vmax.f32 %v762, 0.0
  %v808 = vmax.f32 %v766, 0.0
  %v809 = vmax.f32 %v768, 0.0
  %v810 = vmax.f32 %v770, 0.0
  %v811 = vmax.f32 %v772, 0.0
  %v812 = vmax.f32 %v776, 0.0
  %v813 = vmax.f32 %v778, 0.0
  %v814 = vmax.f32 %v780, 0.0
  %v815 = vmax.f32 %v782, 0.0
  %v816 = vld [vmem:[%s5] sm:$0x3]
  %v817 = vpack.c.bf16 %v786, %v784
  %v818 = vpack.c.bf16 %v787, %v785
  %v819 = vpack.c.bf16 %v790, %v788
  %v820 = vpack.c.bf16 %v791, %v789
  %v821 = vpack.c.bf16 %v794, %v792
  %v822 = vpack.c.bf16 %v795, %v793
  %v823 = vpack.c.bf16 %v798, %v796
  %v824 = vpack.c.bf16 %v799, %v797
  %v825 = vpack.c.bf16 %v802, %v800
  %v826 = vpack.c.bf16 %v803, %v801
  %v827 = vpack.c.bf16 %v806, %v804
  %v828 = vpack.c.bf16 %v807, %v805
  %v829 = vpack.c.bf16 %v810, %v808
  %v830 = vpack.c.bf16 %v811, %v809
  %v831 = vpack.c.bf16 %v814, %v812
  %v832 = vpack.c.bf16 %v815, %v813
  %v833 = vld [vmem:[%s6 + $0x4] ss:$0 sm:$0xff]
  %835 = vset.pattern.permute.xlu0 0
  %836 = vperm.xlu0 %835, %v833
  %v837 = vpop.permute.xlu0 %836
  %v841 = vunpack.c.l.s4 1966171168
  %v842 = vunpack.c.0.s8 %v841
  %v843 = vlaneseq
  %v844 = vshrl.u32 %v843, 7
  %v845 = vsub.s32 %v842, %v844
  %v846 = vrot.slane %v816, %v845
  %v847 = vcombine.high %v846, %v846
  %v849 = vunpack.c.l.s4 1966171168
  %v850 = vunpack.c.0.s8 %v849
  %v851 = vlaneseq
  %v852 = vshrl.u32 %v851, 7
  %v853 = vsub.s32 %v850, %v852
  %v854 = vrot.slane %v846, %v853
  %v856 = vunpack.c.l.s4 1966171168
  %v857 = vunpack.c.0.s8 %v856
  %v858 = vlaneseq
  %v859 = vshrl.u32 %v858, 7
  %v860 = vsub.s32 %v857, %v859
  %v861 = vrot.slane %v847, %v860
  %vm863 = vcmask 588800
  %v865 = vsel %vm863, %v861, 0
  %v868 = vsel %vm863, %v818, 0
  %v871 = vsel %vm863, %v820, 0
  %v874 = vsel %vm863, %v822, 0
  %v877 = vsel %vm863, %v824, 0
  %v880 = vsel %vm863, %v826, 0
  %v883 = vsel %vm863, %v828, 0
  %v886 = vsel %vm863, %v830, 0
  %v889 = vsel %vm863, %v832, 0
  %891 = vmatprep.subr.bf16.mxu0 %v868
  %892 = vmatpush1.bf16.xpose.msra.mxu0 %v817
  %893 = vmatprep.subr.bf16.mxu0 %v871
  %894 = vmatpush1.bf16.xpose.msra.mxu0 %v819
  %895 = vmatprep.subr.bf16.mxu0 %v874
  %896 = vmatpush1.bf16.xpose.msra.mxu0 %v821
  %897 = vmatprep.subr.bf16.mxu0 %v877
  %898 = vmatpush1.bf16.xpose.msra.mxu0 %v823
  %899 = vmatprep.subr.bf16.mxu0 %v880
  %900 = vmatpush1.bf16.xpose.msra.mxu0 %v825
  %901 = vmatprep.subr.bf16.mxu0 %v883
  %902 = vmatpush1.bf16.xpose.msra.mxu0 %v827
  %903 = vmatprep.subr.bf16.mxu0 %v886
  %904 = vmatpush1.bf16.xpose.msra.mxu0 %v829
  %905 = vmatprep.subr.bf16.mxu0 %v889
  %906 = vmatpush1.bf16.xpose.msra.mxu0 %v831
  %907 = vmatprep.subr.bf16.mxu0 0
  %908 = vmatpush1.bf16.xpose.msra.mxu0 0
  %909 = vmatprep.subr.bf16.mxu0 0
  %910 = vmatpush1.bf16.xpose.msra.mxu0 0
  %911 = vmatprep.subr.bf16.mxu0 0
  %912 = vmatpush1.bf16.xpose.msra.mxu0 0
  %913 = vmatprep.subr.bf16.mxu0 0
  %914 = vmatpush1.bf16.xpose.msra.mxu0 0
  %915 = vmatprep.subr.bf16.mxu0 0
  %916 = vmatpush1.bf16.xpose.msra.mxu0 0
  %917 = vmatprep.subr.bf16.mxu0 0
  %918 = vmatpush1.bf16.xpose.msra.mxu0 0
  %919 = vmatprep.subr.bf16.mxu0 0
  %920 = vmatpush1.bf16.xpose.msra.mxu0 0
  %921 = vmatprep.subr.bf16.mxu0 0
  %922 = vmatpush1.bf16.xpose.msra.mxu0 0
  %923 = vmatprep.mubr.bf16.mxu0 %v865
  %924 = vmatmul.mubr.bf16.gmra.mrb[0].mxu0 %v854
  %v925 = vpop.f32.mrb[0].mxu0
  %v926 = vadd.f32 %v837, %v925
  %v927 = vpop.f32.mrb[0].mxu0
  %v928 = vpop.f32.mrb[0].mxu0
  %v929 = vpop.f32.mrb[0].mxu0
  %930 = vdwg.mxu0
  %931 = vst [vmem:[%s7] sm:$0x1] %v926
  // Predicated region
  $region30: #{mlp_forward.1} parent=0 // pred_check
    _
  $region31: #{mlp_forward.1} parent=0 // pred_check_branch
    %933 = sbr.rel (0) target = $region33
  $region32: #{mlp_forward.1} parent=0 // pred_region
    _
  $region33: #{mlp_forward.1} parent=0 // pred_fallthru
    _
  // Predicated region
  $region34: #{mlp_forward.1} parent=0 // pred_check
    _
  $region35: #{mlp_forward.1} parent=0 // pred_check_branch
    %935 = sbr.rel (0) target = $region37
  $region36: #{mlp_forward.1} parent=0 // pred_region
    _
  $region37: #{mlp_forward.1} parent=0 // pred_fallthru
    _

</llo_original>
